<compile_context>
chip_gen: v7x
topology: tpu7x:2x2x1
jax: 0.10.0
libtpu: 0.0.40
codegen_flags: <defaults>
</compile_context>

<pallas_src>
import jax
import jax.numpy as jnp
from jax.experimental import pallas as pl
from jax.experimental.pallas import tpu as pltpu


def _double_sigmoid_kernel(params_ref, x_ref, o_ref):
    out_dtype = o_ref.dtype
    # Native bf16 compute for bf16 IO (keeps the kernel HBM-bound on v6e/v7x);
    # everything else is computed in f32.
    compute_dtype = jnp.bfloat16 if out_dtype == jnp.bfloat16 else jnp.float32

    a = params_ref[0].astype(compute_dtype)   # 0.5 * magnitude
    b = params_ref[1].astype(compute_dtype)   # 0.5 * magnitude * shift

    x = x_ref[...].astype(compute_dtype)
    t = a * x
    # sigmoid(-m*(x+s)) + sigmoid(m*(x-s)) == 1 + 0.5*(tanh(a*x-b) - tanh(a*x+b))
    out = 1.0 + 0.5 * (jnp.tanh(t - b) - jnp.tanh(t + b))
    o_ref[...] = out.astype(out_dtype)


def double_sigmoid(x, shift, magnitude, *,
                   target_block_bytes=4 * 1024 * 1024,
                   vmem_limit_bytes=32 * 1024 * 1024):
    """Pallas implementation of DoubleSigmoid.forward (elementwise, any shape)."""
    orig_shape = x.shape
    orig_dtype = x.dtype
    n = x.size
    itemsize = orig_dtype.itemsize

    x_flat = x.reshape(-1)  # reshape of a contiguous array is free

    # Lane-dense layout: pick the largest 128-multiple lane width dividing n so
    # there is NO pad copy on the way in and NO slice copy on the way out.
    lane_width = next((lw for lw in (1024, 512, 256, 128) if n % lw == 0), None)
    pad = 0
    if lane_width is None:
        # Ragged size: minimal pad to the next 128 multiple (costs an extra
        # HBM pass for the pad + slice).
        # TODO(synk): handle the <128-element tail with a tiny second
        # pallas_call instead of padding/slicing the whole flattened tensor.
        lane_width = 128
        pad = (-n) % 128
        x_flat = jnp.pad(x_flat, (0, pad))

    rows = x_flat.size // lane_width
    x2d = x_flat.reshape(rows, lane_width)

    # Row tile: ~target_block_bytes per block (amortizes the per-step overhead),
    # rounded to the sublane packing, or the full row extent for small inputs.
    sublane = max(8, 32 // itemsize)              # 8 f32 / 16 bf16 / 32 int8
    tm = max(target_block_bytes // (lane_width * itemsize), 1)
    tm = min(tm, rows)
    if tm < rows:
        tm = min(max((tm // sublane) * sublane, sublane), rows)
    grid = (pl.cdiv(rows, tm),)

    # Host-side scalar precompute: a = 0.5*m, b = 0.5*m*shift (f32, SMEM).
    a = 0.5 * jnp.asarray(magnitude, jnp.float32)
    b = a * jnp.asarray(shift, jnp.float32)
    params = jnp.stack([a, b])

    out2d = pl.pallas_call(
        _double_sigmoid_kernel,
        out_shape=jax.ShapeDtypeStruct((rows, lane_width), orig_dtype),
        grid=grid,
        in_specs=[
            pl.BlockSpec(memory_space=pltpu.MemorySpace.SMEM),   # params
            pl.BlockSpec((tm, lane_width), lambda i: (i, 0)),    # x tile
        ],
        out_specs=pl.BlockSpec((tm, lane_width), lambda i: (i, 0)),
        compiler_params=pltpu.CompilerParams(
            # Independent row blocks.
            # TODO(synk): on v7x use pltpu.CORE_PARALLEL (or pl.core_map over
            # pltpu.create_tensorcore_mesh) to explicitly split rows across
            # the 2 TensorCores.
            dimension_semantics=("parallel",),
            vmem_limit_bytes=vmem_limit_bytes,
        ),
    )(params, x2d)

    out_flat = out2d.reshape(-1)
    if pad:
        out_flat = out_flat[:n]
    return out_flat.reshape(orig_shape)


def double_sigmoid_ref(x, shift, magnitude):
    """Pure-JAX reference matching the PyTorch module."""
    s1 = jax.nn.sigmoid(-magnitude * (x + shift))
    s2 = jax.nn.sigmoid(magnitude * (x - shift))
    return s1 + s2


if __name__ == "__main__":
    # Module "parameters" (from __init__): scalar shift and magnitude.
    shift = 0.5
    magnitude = 3.0

    key = jax.random.PRNGKey(0)
    x = jax.random.normal(key, (2, 4, 16, 16), dtype=jnp.float32)  # NCHW

    out = double_sigmoid(x, shift, magnitude)
    out = jax.block_until_ready(out)

    ref = double_sigmoid_ref(x, shift, magnitude)
    assert out.shape == x.shape and out.dtype == x.dtype
    assert jnp.allclose(out, ref, atol=1e-5, rtol=1e-5)

    print("KERNEL_OK")
</pallas_src>

<mosaic_0001>
module attributes {stable_mosaic.version = 11 : i64} {
  func.func @_double_sigmoid_kernel(%arg0: i32, %arg1: memref<2xf32, #tpu.memory_space<smem>>, %arg2: memref<2x1024xf32, #tpu.memory_space<vmem>>, %arg3: memref<2x1024xf32, #tpu.memory_space<vmem>>) attributes {dimension_semantics = [#tpu.dimension_semantics<parallel>], iteration_bounds = array<i64: 1>, scalar_prefetch = 0 : i64, scratch_operands = 0 : i64, tpu.core_type = #tpu.core_type<tc>, window_params = [{transform_indices = @transform_0, window_bounds = array<i64: 2>}, {transform_indices = @transform_1, window_bounds = array<i64: 2, 1024>}, {transform_indices = @transform_2, window_bounds = array<i64: 2, 1024>}]} {
    %c0 = arith.constant 0 : index
    %0 = memref.load %arg1[%c0] : memref<2xf32, #tpu.memory_space<smem>>
    %c1 = arith.constant 1 : index
    %1 = memref.load %arg1[%c1] : memref<2xf32, #tpu.memory_space<smem>>
    %c0_0 = arith.constant 0 : index
    %c0_1 = arith.constant 0 : index
    %2 = vector.load %arg2[%c0_0, %c0_1] : memref<2x1024xf32, #tpu.memory_space<vmem>>, vector<2x1024xf32>
    %3 = vector.broadcast %0 : f32 to vector<2x1024xf32>
    %4 = arith.mulf %3, %2 : vector<2x1024xf32>
    %5 = vector.broadcast %1 : f32 to vector<2x1024xf32>
    %6 = arith.subf %4, %5 : vector<2x1024xf32>
    %7 = math.tanh %6 : vector<2x1024xf32>
    %8 = vector.broadcast %1 : f32 to vector<2x1024xf32>
    %9 = arith.addf %4, %8 : vector<2x1024xf32>
    %10 = math.tanh %9 : vector<2x1024xf32>
    %11 = arith.subf %7, %10 : vector<2x1024xf32>
    %cst = arith.constant 5.000000e-01 : f32
    %12 = vector.broadcast %cst : f32 to vector<2x1024xf32>
    %13 = arith.mulf %12, %11 : vector<2x1024xf32>
    %cst_2 = arith.constant 1.000000e+00 : f32
    %14 = vector.broadcast %cst_2 : f32 to vector<2x1024xf32>
    %15 = arith.addf %14, %13 : vector<2x1024xf32>
    %c0_3 = arith.constant 0 : index
    %c0_4 = arith.constant 0 : index
    %16 = vector.load %arg3[%c0_3, %c0_4] : memref<2x1024xf32, #tpu.memory_space<vmem>>, vector<2x1024xf32>
    tpu.vector_store %arg3[%c0_3, %c0_4], %15 {strides = array<i32>} : memref<2x1024xf32, #tpu.memory_space<vmem>>, vector<2x1024xf32>,
    return
  }
  func.func @transform_0(%arg0: i32) -> i32 {
    %c0_i32 = arith.constant 0 : i32
    %c0_i32_0 = arith.constant 0 : i32
    return %c0_i32 : i32
  }
  func.func @transform_1(%arg0: i32) -> (i32, i32) {
    %c0_i32 = arith.constant 0 : i32
    %c0_i32_0 = arith.constant 0 : i32
    return %arg0, %c0_i32 : i32, i32
  }
  func.func @transform_2(%arg0: i32) -> (i32, i32) {
    %c0_i32 = arith.constant 0 : i32
    %c0_i32_0 = arith.constant 0 : i32
    return %arg0, %c0_i32 : i32, i32
  }
}

</mosaic_0001>

<llo_original>
// kernel: tpu_custom_call.1
$region0: #{tpu_custom_call.1}
  #allocation0 [shape = 'u32[]', space=smem, size = 0x4, offset = 0x4, fixed_abs, tag = 'smem constant byte address 0x4 - core index']
  #allocation1 [shape = 'u32[144,128]{1,0:T(1,128)}', space=vmem, size = 0x12000, scoped, tag = 'internal scratch']
  %s0 = inlined_call_operand.hbm [shape: f32[2], index: 0, kind: input, shape index: {}]
  %s1 = inlined_call_operand.hbm [shape: f32[2,1024], index: 1, kind: input, shape index: {}]
  %s2 = inlined_call_operand.hbm [shape: f32[2,1024], index: 2, kind: output, shape index: {}]
  %s3 = sld [smem:[#allocation0]]
  $region26: #{tpu_custom_call.1} parent=0
    _
  %s5 = ssub.s32 1, %s3
  %s6 = scalar_select 0, %s5, %s3
  $region1: #{tpu_custom_call.1} parent=0
    #allocation2 [shape = 'u8[512]{0}', space=smem, size = 0x200, scoped, tag = 'input window, operand 0, single buffered']
    #allocation3 [shape = 's32[1]{0}', space=sflag, size = 0x4, scoped, tag = 'scoped memory for tpu_custom_call.1']
    #allocation4 [shape = 's32[1]{0}', space=sflag, size = 0x4, scoped, tag = 'scoped memory for tpu_custom_call.1']
    #allocation5 [shape = 's32[1]{0}', space=sflag, size = 0x4, scoped, tag = 'scoped memory for tpu_custom_call.1']
    #allocation6 [shape = 'u8[8192]{0}', space=vmem, size = 0x2000, scoped, tag = 'input window, operand 1, single buffered']
    #allocation7 [shape = 'u8[8192]{0}', space=vmem, size = 0x2000, scoped, tag = 'output window, operand 0, single buffered']
    %7 = vsyncpa [#allocation5], 0
    %8 = vsyncpa [#allocation3], 0
    %9 = vsyncpa [#allocation4], 0
    // Predicated region
    $region2: #{tpu_custom_call.1} parent=1 // pred_check
      _
    $region3: #{tpu_custom_call.1} parent=1 // pred_check_branch
      %11 = sbr.rel (0) target = $region5
    $region4: #{tpu_custom_call.1} parent=1 // pred_region
      %s13 = ssub.s32 16, 16
      %14 = vsyncadd [#allocation5], %s13
      %17 = dma.hbm_to_smem %s0, 16, [#allocation2], [#allocation5]
    $region5: #{tpu_custom_call.1} parent=1 // pred_fallthru
      _
    // Predicated region
    $region6: #{tpu_custom_call.1} parent=1 // pred_check
      _
    $region7: #{tpu_custom_call.1} parent=1 // pred_check_branch
      %19 = sbr.rel (0) target = $region9
    $region8: #{tpu_custom_call.1} parent=1 // pred_region
      %s21 = ssub.s32 256, 256
      %22 = vsyncadd [#allocation3], %s21
      %s24 = sshll.u32 [#allocation6], 4
      %s25 = int_to_ptr.vmem [resolvable:$true] %s24
      %27 = dma.hbm_to_vmem [thread:$0]  %s1, 256, %s25, [#allocation3]
    $region9: #{tpu_custom_call.1} parent=1 // pred_fallthru
      _
    // Predicated region
    $region10: #{tpu_custom_call.1} parent=1 // pred_check
      _
    $region11: #{tpu_custom_call.1} parent=1 // pred_check_branch
      %29 = sbr.rel (0) target = $region13
    $region12: #{tpu_custom_call.1} parent=1 // pred_region
      %30 = dma.done [#allocation5], 16
    $region13: #{tpu_custom_call.1} parent=1 // pred_fallthru
      _
    // Predicated region
    $region14: #{tpu_custom_call.1} parent=1 // pred_check
      _
    $region15: #{tpu_custom_call.1} parent=1 // pred_check_branch
      %32 = sbr.rel (0) target = $region17
    $region16: #{tpu_custom_call.1} parent=1 // pred_region
      %33 = dma.done [#allocation3], 256
    $region17: #{tpu_custom_call.1} parent=1 // pred_fallthru
      _
    %34 = sfence
    %s35 = sld [smem:[#allocation2]]
    %s36 = sld [smem:[#allocation2 + $0x1]]
    %v37 = vld [vmem:[#allocation6] sm:$0xff]
    %v38 = vld [vmem:[#allocation6 + $0x8] sm:$0xff]
    %v39 = vstv %s35
    %v40 = vmul.f32 %v39, %v37
    %v41 = vmul.f32 %v39, %v38
    %v42 = vstv %s36
    %v43 = vsub.f32 %v40, %v42
    %v44 = vsub.f32 %v41, %v42
    %v45 = vtanh.pop %v43
    %v46 = vtanh.pop %v44
    %v47 = vadd.f32 %v40, %v42
    %v48 = vadd.f32 %v41, %v42
    %v49 = vtanh.pop %v47
    %v50 = vtanh.pop %v48
    %v51 = vsub.f32 %v45, %v49
    %v52 = vsub.f32 %v46, %v50
    %v53 = vmul.f32 %v51, 0.5
    %v54 = vmul.f32 %v52, 0.5
    %v55 = vadd.f32 %v53, 1.0
    %v56 = vadd.f32 %v54, 1.0
    %57 = vst [vmem:[#allocation7] sm:$0xff] %v55
    %58 = vst [vmem:[#allocation7 + $0x8] sm:$0xff] %v56
    // Predicated region
    $region18: #{tpu_custom_call.1} parent=1 // pred_check
      _
    $region19: #{tpu_custom_call.1} parent=1 // pred_check_branch
      %60 = sbr.rel (0) target = $region21
    $region20: #{tpu_custom_call.1} parent=1 // pred_region
      %s62 = ssub.s32 256, 256
      %63 = vsyncadd [#allocation4], %s62
      %s65 = sshll.u32 [#allocation7], 4
      %s66 = int_to_ptr.vmem [resolvable:$true] %s65
      %68 = dma.vmem_to_hbm [thread:$0]  %s66, 256, %s2, [#allocation4]
    $region21: #{tpu_custom_call.1} parent=1 // pred_fallthru
      _
    // Predicated region
    $region22: #{tpu_custom_call.1} parent=1 // pred_check
      _
    $region23: #{tpu_custom_call.1} parent=1 // pred_check_branch
      %70 = sbr.rel (0) target = $region25
    $region24: #{tpu_custom_call.1} parent=1 // pred_region
      %71 = dma.done [#allocation4], 256
    $region25: #{tpu_custom_call.1} parent=1 // pred_fallthru
      _
    %72 = vsyncpa [#allocation3], 1
    %73 = vsyncpa [#allocation4], 1
    %74 = vsyncpa [#allocation5], 1

</llo_original>
